<compile_context>
chip_gen: v6e
topology: v6e:2x2x1
jax: 0.10.0
libtpu: 0.0.40
codegen_flags: <defaults>
</compile_context>

<pallas_src>
import functools
import math

import jax
import jax.numpy as jnp
from jax import lax
from jax.experimental import pallas as pl
from jax.experimental.pallas import tpu as pltpu


_DEFAULT_VMEM_BYTES = 64 * 1024 * 1024   # conservative fallback (v7x per-TC VMEM)


def _vmem_capacity_bytes():
    try:
        return int(pltpu.get_tpu_info().vmem_capacity_bytes)
    except Exception:
        return _DEFAULT_VMEM_BYTES


def _round_up(x, m):
    return ((x + m - 1) // m) * m


def _choose_tile(rows, cols, itemsize, tile_bytes):
    """(8,128)-aligned (br, bl) tile <= ~tile_bytes; the grid uses pl.cdiv plus
    in-kernel edge masking, so the tile does NOT need to divide (rows, cols)."""
    elems = max(tile_bytes // itemsize, 8 * 128)
    cols_pad = _round_up(cols, 128)
    bl = min(cols_pad, max(128, ((elems // 8) // 128) * 128))
    rows_pad = _round_up(rows, 8)
    br = min(rows_pad, max(8, ((elems // bl) // 8) * 8))
    return br, bl


def _buffered_spec(block_shape, index_map, depth):
    """BlockSpec with deeper multi-buffering when the running JAX supports it."""
    buffered = getattr(pl, "Buffered", None)
    if buffered is not None:
        try:
            return pl.BlockSpec(block_shape, index_map, pipeline_mode=buffered(depth))
        except TypeError:
            pass
    return pl.BlockSpec(block_shape, index_map)


def _fused_fakequant_kernel(x_ref, o_ref, *, qmin_f, qmax_f):
    """Single-pass path (whole slab resident in VMEM): abs-max -> scale ->
    quantize/round/clamp/dequantize. 2 HBM passes instead of 3."""
    x = x_ref[...]
    # abs / max are exact in the native dtype -> no slab-sized f32 temp here.
    float_range = jnp.max(jnp.abs(x)).astype(jnp.float32)
    # All-zero guard: any positive range gives an exactly-zero output and avoids
    # qmax / 0 -> inf followed by 0 * inf = NaN.
    float_range = jnp.where(float_range > 0.0, float_range, jnp.float32(1.0))
    scale = float_range / qmax_f          # symmetric quantizer: zero_point == 0
    inv_scale = qmax_f / float_range      # reciprocal-multiply; no per-element divide
    q = jnp.clip(jnp.round(x.astype(jnp.float32) * inv_scale), qmin_f, qmax_f)
    o_ref[...] = (q * scale).astype(o_ref.dtype)


def _absmax_partial_kernel(x_ref, part_ref, *, rows, cols, br, bl,
                           mask_rows, mask_cols):
    """Pass 1: per-row-block partial abs-max.

    Grid is (grid_r, grid_l). The (1, 8, bl) output block is indexed by ri only,
    so it stays resident across the sequential ('arbitrary') li axis while the
    ri axis is 'parallel' (megacore sharding on v7x). Hot path is VPU-only
    elementwise maxes; the tiny final cross-lane reduce happens in plain JAX."""
    ri = pl.program_id(0)
    li = pl.program_id(1)

    a = jnp.abs(x_ref[...])                       # (br, bl), native dtype (exact)

    valid = None
    if mask_rows:
        row_ids = lax.broadcasted_iota(jnp.int32, (br, bl), 0) + ri * br
        valid = row_ids < rows
    if mask_cols:
        col_ids = lax.broadcasted_iota(jnp.int32, (br, bl), 1) + li * bl
        col_ok = col_ids < cols
        valid = col_ok if valid is None else jnp.logical_and(valid, col_ok)
    if valid is not None:
        a = jnp.where(valid, a, jnp.zeros_like(a))

    # Fold sublane groups: (br, bl) -> (br//8, 8, bl) -> max over axis 0.
    # Splitting the leading (non-layout) axis keeps vreg tiling; pure VPU max.
    part = jnp.max(a.reshape(br // 8, 8, bl), axis=0).astype(jnp.float32)
    part3 = part.reshape(1, 8, bl)

    @pl.when(li == 0)
    def _():
        part_ref[...] = part3

    @pl.when(li != 0)
    def _():
        part_ref[...] = jnp.maximum(part_ref[...], part3)


def _fakequant_kernel(scale_ref, inv_ref, x_ref, o_ref, *, qmin_f, qmax_f):
    """Pass 2: streaming elementwise fake-quant (quantize/round/clamp/dequantize).
    Edge blocks may compute on padded garbage; Pallas masks the ragged writes."""
    x = x_ref[...].astype(jnp.float32)
    q = jnp.clip(jnp.round(x * inv_ref[0, 0]), qmin_f, qmax_f)
    o_ref[...] = (q * scale_ref[0, 0]).astype(o_ref.dtype)


@functools.partial(jax.jit, static_argnames=("bits", "force_two_pass"))
def quantizer_forward(x, bits=8, force_two_pass=False):
    """Forward of Quantizer (SymmetricQuantizer + per-tensor range tracker)."""
    if bits == 32:
        return x
    assert bits != 1, "Binary quantization is not supported"
    # TODO(synk): per-channel (dim=1) range tracking and the asymmetric
    # (nonzero zero_point) quantizer variants are not implemented here.

    qmin_f = float(-(2 ** (bits - 1)))
    qmax_f = float(2 ** (bits - 1) - 1)

    orig_shape = x.shape
    if x.ndim == 0:
        R, L = 1, 1
    else:
        L = orig_shape[-1]
        R = max(1, math.prod(orig_shape) // max(L, 1))
    x2 = x.reshape(R, L)                    # keep native dtype: no extra HBM cast pass
    itemsize = jnp.dtype(x.dtype).itemsize

    vmem_cap = _vmem_capacity_bytes()
    vmem_limit = min((vmem_cap * 3) // 4, 112 * 1024 * 1024)

    # ---------------- fused single-pass fast path ----------------
    # Generation-aware threshold: in + out slabs (native dtype) plus ~2 slab-sized
    # f32 temporaries for the quantize step must fit inside the scoped-VMEM limit.
    slab_native = R * L * itemsize
    slab_f32 = R * L * 4
    fused_budget = 2 * slab_native + 2 * slab_f32 + (2 << 20)
    if (not force_two_pass) and fused_budget <= vmem_limit:
        out2 = pl.pallas_call(
            functools.partial(_fused_fakequant_kernel, qmin_f=qmin_f, qmax_f=qmax_f),
            out_shape=jax.ShapeDtypeStruct((R, L), x2.dtype),
            compiler_params=pltpu.CompilerParams(vmem_limit_bytes=vmem_limit),
        )(x2)
        return out2.reshape(orig_shape)

    # ---------------- two-pass streaming path ----------------
    # ~8 MiB tiles on 128-MiB-VMEM parts (v5e/v6e), ~4 MiB on v7x (64 MiB VMEM).
    tile_bytes = max(4 * 1024 * 1024, vmem_cap // 16)

    # Pass 1: per-row-block partial abs-max (row axis megacore-parallel).
    br1, bl1 = _choose_tile(R, L, itemsize, tile_bytes)
    grid1 = (pl.cdiv(R, br1), pl.cdiv(L, bl1))
    partials = pl.pallas_call(
        functools.partial(_absmax_partial_kernel, rows=R, cols=L, br=br1, bl=bl1,
                          mask_rows=(R % br1 != 0), mask_cols=(L % bl1 != 0)),
        out_shape=jax.ShapeDtypeStruct((grid1[0], 8, bl1), jnp.float32),
        grid=grid1,
        in_specs=[_buffered_spec((br1, bl1), lambda ri, li: (ri, li), depth=3)],
        out_specs=pl.BlockSpec((1, 8, bl1), lambda ri, li: (ri, 0, 0)),
        compiler_params=pltpu.CompilerParams(
            dimension_semantics=("parallel", "arbitrary"),
            vmem_limit_bytes=vmem_limit),
    )(x2)

    # Tiny final reduce + scale derivation in plain JAX (operates on a few KiB).
    float_range = jnp.max(partials)
    float_range = jnp.where(float_range > 0.0, float_range, jnp.float32(1.0))
    scale = (float_range / qmax_f).reshape(1, 1)
    inv_scale = (qmax_f / float_range).reshape(1, 1)
    # TODO(synk): inv_scale = qmax/float_range (not 1/scale); may differ from the
    # PyTorch divide-by-scale by 1 LSB at exact rounding boundaries.

    # Pass 2: streaming elementwise fake-quant (out-of-place; donate x at the
    # call site if in-place buffer reuse is desired — aliasing a non-donated
    # jit parameter would force a defensive full-tensor copy).
    br2, bl2 = _choose_tile(R, L, itemsize, tile_bytes)
    grid2 = (pl.cdiv(R, br2), pl.cdiv(L, bl2))
    out2 = pl.pallas_call(
        functools.partial(_fakequant_kernel, qmin_f=qmin_f, qmax_f=qmax_f),
        out_shape=jax.ShapeDtypeStruct((R, L), x2.dtype),
        grid=grid2,
        in_specs=[pl.BlockSpec(memory_space=pltpu.MemorySpace.SMEM),
                  pl.BlockSpec(memory_space=pltpu.MemorySpace.SMEM),
                  pl.BlockSpec((br2, bl2), lambda ri, li: (ri, li))],
        out_specs=pl.BlockSpec((br2, bl2), lambda ri, li: (ri, li)),
        compiler_params=pltpu.CompilerParams(
            dimension_semantics=("parallel", "parallel"),
            vmem_limit_bytes=vmem_limit),
    )(scale, inv_scale, x2)

    return out2.reshape(orig_shape)


def _reference_forward(x, bits=8):
    """Pure-JAX reference with the same (mathematically equivalent) formulation."""
    if bits == 32:
        return x
    qmin = float(-(2 ** (bits - 1)))
    qmax = float(2 ** (bits - 1) - 1)
    xf = x.astype(jnp.float32)
    float_range = jnp.max(jnp.abs(xf))
    float_range = jnp.where(float_range > 0.0, float_range, jnp.float32(1.0))
    scale = float_range / qmax
    inv_scale = qmax / float_range
    q = jnp.clip(jnp.round(xf * inv_scale), qmin, qmax)
    return (q * scale).astype(x.dtype)


if __name__ == "__main__":
    key = jax.random.PRNGKey(0)
    k1, k2, k3, k4 = jax.random.split(key, 4)

    # Small (N, C, L) 1-D activation — exercises the fused single-pass path.
    x_small = jax.random.normal(k1, (2, 8, 128), dtype=jnp.float32) * 3.0
    out = jax.block_until_ready(quantizer_forward(x_small, bits=8))
    ref = _reference_forward(x_small, bits=8)
    assert out.shape == x_small.shape and out.dtype == x_small.dtype
    assert jnp.allclose(out, ref, atol=1e-5, rtol=1e-5), "fused path mismatch"

    # Two-pass path (partial abs-max kernel + streaming fake-quant), aligned dims.
    x_big = jax.random.normal(k2, (4, 16, 256), dtype=jnp.float32) * 2.0
    out2 = jax.block_until_ready(
        quantizer_forward(x_big, bits=6, force_two_pass=True))
    ref2 = _reference_forward(x_big, bits=6)
    assert out2.shape == x_big.shape and out2.dtype == x_big.dtype
    assert jnp.allclose(out2, ref2, atol=1e-5, rtol=1e-5), "two-pass mismatch"

    # Two-pass path with ragged dims (cdiv grid + in-kernel edge masking).
    x_ragged = jax.random.normal(k3, (3, 5, 100), dtype=jnp.float32) * 1.5
    out3 = jax.block_until_ready(
        quantizer_forward(x_ragged, bits=8, force_two_pass=True))
    ref3 = _reference_forward(x_ragged, bits=8)
    assert out3.shape == x_ragged.shape
    assert jnp.allclose(out3, ref3, atol=1e-5, rtol=1e-5), "ragged two-pass mismatch"

    # bf16 input — native-dtype abs-max, f32 quantize math, bf16 output.
    x_bf16 = (jax.random.normal(k4, (2, 8, 128), dtype=jnp.float32) * 2.0
              ).astype(jnp.bfloat16)
    out4 = jax.block_until_ready(quantizer_forward(x_bf16, bits=8))
    ref4 = _reference_forward(x_bf16, bits=8)
    assert out4.dtype == jnp.bfloat16
    assert jnp.allclose(out4.astype(jnp.float32), ref4.astype(jnp.float32),
                        atol=1e-2, rtol=1e-2), "bf16 mismatch"

    # All-zero input must stay finite (previous tiny-clamp guard produced NaN).
    x_zero = jnp.zeros((2, 8, 128), dtype=jnp.float32)
    out5 = jax.block_until_ready(quantizer_forward(x_zero, bits=8))
    assert bool(jnp.all(jnp.isfinite(out5))) and bool(jnp.all(out5 == 0.0)), \
        "all-zero guard failed (fused)"
    out5b = jax.block_until_ready(
        quantizer_forward(x_zero, bits=8, force_two_pass=True))
    assert bool(jnp.all(out5b == 0.0)), "all-zero guard failed (two-pass)"

    # bits == 32 passthrough path.
    out32 = jax.block_until_ready(quantizer_forward(x_small, bits=32))
    assert jnp.array_equal(out32, x_small)

    print("KERNEL_OK")
</pallas_src>

<mosaic_0001>
module attributes {stable_mosaic.version = 11 : i64} {
  func.func @_fused_fakequant_kernel(%arg0: memref<16x128xf32, #tpu.memory_space<vmem>>, %arg1: memref<16x128xf32, #tpu.memory_space<vmem>>) attributes {dimension_semantics = [], scalar_prefetch = 0 : i64, scratch_operands = 0 : i64, tpu.core_type = #tpu.core_type<tc>} {
    %c0 = arith.constant 0 : index
    %c0_0 = arith.constant 0 : index
    %0 = vector.load %arg0[%c0, %c0_0] : memref<16x128xf32, #tpu.memory_space<vmem>>, vector<16x128xf32>
    %1 = math.absf %0 : vector<16x128xf32>
    %2 = vector.shape_cast %1 : vector<16x128xf32> to vector<1x16x128xf32>
    %cst = arith.constant dense<0xFF800000> : vector<1xf32>
    %3 = vector.multi_reduction <maximumf>, %2, %cst [1, 2] : vector<1x16x128xf32> to vector<1xf32>
    %4 = vector.shape_cast %3 : vector<1xf32> to vector<1x1x1xf32>
    %5 = vector.extract %4[0, 0, 0] : f32 from vector<1x1x1xf32>
    %cst_1 = arith.constant 0.000000e+00 : f32
    %6 = arith.cmpf ogt, %5, %cst_1 : f32
    %cst_2 = arith.constant 1.000000e+00 : f32
    %7 = arith.select %6, %5, %cst_2 : f32
    %cst_3 = arith.constant 1.270000e+02 : f32
    %8 = arith.divf %7, %cst_3 : f32
    %cst_4 = arith.constant 1.270000e+02 : f32
    %9 = arith.divf %cst_4, %7 : f32
    %10 = vector.broadcast %9 : f32 to vector<16x128xf32>
    %11 = arith.mulf %0, %10 : vector<16x128xf32>
    %12 = math.roundeven %11 : vector<16x128xf32>
    %cst_5 = arith.constant -1.280000e+02 : f32
    %cst_6 = arith.constant 1.270000e+02 : f32
    %13 = vector.broadcast %cst_5 : f32 to vector<16x128xf32>
    %14 = arith.maximumf %13, %12 : vector<16x128xf32>
    %15 = vector.broadcast %cst_6 : f32 to vector<16x128xf32>
    %16 = arith.minimumf %15, %14 : vector<16x128xf32>
    %17 = vector.broadcast %8 : f32 to vector<16x128xf32>
    %18 = arith.mulf %16, %17 : vector<16x128xf32>
    %c0_7 = arith.constant 0 : index
    %c0_8 = arith.constant 0 : index
    %19 = vector.load %arg1[%c0_7, %c0_8] : memref<16x128xf32, #tpu.memory_space<vmem>>, vector<16x128xf32>
    tpu.vector_store %arg1[%c0_7, %c0_8], %18 {strides = array<i32>} : memref<16x128xf32, #tpu.memory_space<vmem>>, vector<16x128xf32>,
    return
  }
}

</mosaic_0001>

<llo_original>
// kernel: quantizer_forward.1
$region0: #{quantizer_forward.1}
  #allocation0 [shape = 'u32[]', space=smem, size = 0x4, offset = 0x4, fixed_abs, tag = 'smem constant byte address 0x4 - core index']
  #allocation1 [shape = 'u32[144,128]{1,0:T(1,128)}', space=vmem, size = 0x12000, scoped, tag = 'internal scratch']
  %s0 = inlined_call_operand.hbm [shape: f32[16,128], index: 0, kind: input, shape index: {}]
  %s1 = inlined_call_operand.hbm [shape: f32[16,128], index: 1, kind: output, shape index: {}]
  %s2 = sld [smem:[#allocation0]]
  $region18: #{quantizer_forward.1} parent=0
    _
  %s4 = ssub.s32 1, %s2
  %s5 = scalar_select 0, %s4, %s2
  $region1: #{quantizer_forward.1} parent=0
    #allocation2 [shape = 'u8[8192]{0}', space=vmem, size = 0x2000, scoped, tag = 'input window, operand 0, single buffered']
    #allocation3 [shape = 's32[1]{0}', space=sflag, size = 0x4, scoped, tag = 'scoped memory for quantizer_forward.1']
    #allocation4 [shape = 's32[1]{0}', space=sflag, size = 0x4, scoped, tag = 'scoped memory for quantizer_forward.1']
    #allocation5 [shape = 'u8[8192]{0}', space=vmem, size = 0x2000, scoped, tag = 'output window, operand 0, single buffered']
    %6 = vsyncpa [#allocation3], 0
    %7 = vsyncpa [#allocation4], 0
    // Predicated region
    $region2: #{quantizer_forward.1} parent=1 // pred_check
      _
    $region3: #{quantizer_forward.1} parent=1 // pred_check_branch
      %9 = sbr.rel (0) target = $region5
    $region4: #{quantizer_forward.1} parent=1 // pred_region
      %s11 = ssub.s32 256, 256
      %12 = vsyncadd [#allocation3], %s11
      %s13 = sshll.u32 [#allocation2], 4
      %s14 = int_to_ptr.vmem [resolvable:$true] %s13
      %19 = dma.hbm_to_vmem [thread:$0]  %s0, 256, %s14, [#allocation3], 128, 128, 8
    $region5: #{quantizer_forward.1} parent=1 // pred_fallthru
      _
    // Predicated region
    $region6: #{quantizer_forward.1} parent=1 // pred_check
      _
    $region7: #{quantizer_forward.1} parent=1 // pred_check_branch
      %21 = sbr.rel (0) target = $region9
    $region8: #{quantizer_forward.1} parent=1 // pred_region
      %22 = dma.done [#allocation3], 256
    $region9: #{quantizer_forward.1} parent=1 // pred_fallthru
      _
    %v23 = vld [vmem:[#allocation2] sm:$0xff]
    %v24 = vld [vmem:[#allocation2 + $0x8] sm:$0xff]
    %v25 = vand.u32 2147483647, %v23
    %v26 = vand.u32 2147483647, %v24
    %v27 = vmax.f32 %v25, %v26
    %28 = vmax.xlane.f32.xlu0 %v27
    %v29 = vpop.xlane.xlu0 %28
    %v30 = vrot.slane %v29, 4
    %v31 = vmax.f32 %v29, %v30
    %v32 = vrot.slane %v31, 2
    %v33 = vmax.f32 %v31, %v32
    %v34 = vrot.slane %v33, 1
    %v35 = vmax.f32 %v33, %v34
    %s36 = vtos %v35
    %p37 = scmp.gt.f32.partialorder %s36, 0.0
    %s38 = scalar_select %p37, %s36, 1.0
    %v39 = vrcp.pop 127.0
    %s40 = vtos %v39
    %s41 = smul.f32 %s38, %s40
    %v42 = vstv %s38
    %v43 = vrcp.pop %v42
    %s44 = vtos %v43
    %s45 = smul.f32 127.0, %s44
    %v46 = vstv %s45
    %v47 = vmul.f32 %v23, %v46
    %v48 = vmul.f32 %v24, %v46
    %v49 = vround.ne.pseudo %v47
    %v50 = vround.ne.pseudo %v48
    %v51 = vmax.f32 %v49, -128.0
    %v52 = vmax.f32 %v50, -128.0
    %v53 = vmin.f32 %v51, 127.0
    %v54 = vmin.f32 %v52, 127.0
    %v55 = vstv %s41
    %v56 = vmul.f32 %v53, %v55
    %v57 = vmul.f32 %v54, %v55
    %58 = vst [vmem:[#allocation5] sm:$0xff] %v56
    %59 = vst [vmem:[#allocation5 + $0x8] sm:$0xff] %v57
    // Predicated region
    $region10: #{quantizer_forward.1} parent=1 // pred_check
      _
    $region11: #{quantizer_forward.1} parent=1 // pred_check_branch
      %61 = sbr.rel (0) target = $region13
    $region12: #{quantizer_forward.1} parent=1 // pred_region
      %s63 = ssub.s32 256, 256
      %64 = vsyncadd [#allocation4], %s63
      %s65 = sshll.u32 [#allocation5], 4
      %s66 = int_to_ptr.vmem [resolvable:$true] %s65
      %71 = dma.vmem_to_hbm [thread:$0]  %s66, 256, %s1, [#allocation4], 128, 128, 8
    $region13: #{quantizer_forward.1} parent=1 // pred_fallthru
      _
    // Predicated region
    $region14: #{quantizer_forward.1} parent=1 // pred_check
      _
    $region15: #{quantizer_forward.1} parent=1 // pred_check_branch
      %73 = sbr.rel (0) target = $region17
    $region16: #{quantizer_forward.1} parent=1 // pred_region
      %74 = dma.done [#allocation4], 256
    $region17: #{quantizer_forward.1} parent=1 // pred_fallthru
      _
    %75 = vsyncpa [#allocation3], 1
    %76 = vsyncpa [#allocation4], 1

</llo_original>
